<compile_context>
chip_gen: v5e
topology: v5e:2x2
jax: 0.10.0
libtpu: 0.0.40
codegen_flags: <defaults>
</compile_context>

<pallas_src>
import jax
import jax.numpy as jnp
from jax.experimental import pallas as pl
from jax.experimental.pallas import tpu as pltpu


def pgmonitor_kernel(state_ref, w_ref, b_ref, out_ref):
    """state: (B, D_in) VMEM; w: (1, D_in) VMEM; b: (1, 1) SMEM; out: (1, B)."""
    # VPU elementwise multiply against the fused weight row (broadcast over rows).
    prod = state_ref[...] * w_ref[...]                     # (B, D_in)
    # XLU lane reduction per row + fused scalar bias from SMEM.
    y = jnp.sum(prod, axis=-1) + b_ref[0, 0]               # (B,)
    # EUP sigmoid; write lane-dense (batch along lanes).
    out_ref[...] = jax.nn.sigmoid(y)[None, :].astype(out_ref.dtype)   # (1, B)


def fuse_pgmonitor_params(w1, b1, w2, b2):
    """One-time fold of the two activation-free Linears.

    w1: (D_in, H) (pre-transposed PyTorch weight), b1: (H,)
    w2: (H, 1), b2: (1,)
    Returns w_fused: (1, D_in), b_fused: (1, 1) with
      sigmoid((x @ w1 + b1) @ w2 + b2) == sigmoid(x @ w_fused.T + b_fused).
    """
    w_fused = (w1 @ w2).reshape(1, -1)          # (1, D_in)
    b_fused = (b1 @ w2 + b2).reshape(1, 1)      # (1, 1)
    return w_fused, b_fused


def pgmonitor_forward(state, w_fused, b_fused):
    """state: (B, D_in) f32; returns (B, 1) f32 == sigmoid(L2(L1(state)))."""
    B = state.shape[0]
    out_t = pl.pallas_call(
        pgmonitor_kernel,
        out_shape=jax.ShapeDtypeStruct((1, B), jnp.float32),
        in_specs=[
            pl.BlockSpec(memory_space=pltpu.MemorySpace.VMEM),   # state (B, D_in)
            pl.BlockSpec(memory_space=pltpu.MemorySpace.VMEM),   # fused weight row (1, D_in)
            pl.BlockSpec(memory_space=pltpu.MemorySpace.SMEM),   # fused bias scalar (1, 1)
        ],
        out_specs=pl.BlockSpec(memory_space=pltpu.MemorySpace.VMEM),
    )(state, w_fused, b_fused)
    # Layout plumbing only: present the PyTorch-shaped (B, 1) result.
    return out_t.reshape(B, 1)


if __name__ == "__main__":
    # Small, self-consistent shapes:
    #   maxInput - 1 = 16  (instruction-length feature dim)
    #   hidden_size  = 32
    #   batch        = 8
    B, D_IN, HID = 8, 16, 32

    key = jax.random.PRNGKey(0)
    k_state, k_w1, k_b1, k_w2, k_b2 = jax.random.split(key, 5)

    state = jax.random.normal(k_state, (B, D_IN), dtype=jnp.float32)
    # Synthetic parameters in PyTorch-Linear layout (pre-transposed to (in, out)).
    w1 = jax.random.normal(k_w1, (D_IN, HID), dtype=jnp.float32) * 0.1
    b1 = jax.random.normal(k_b1, (HID,), dtype=jnp.float32) * 0.1
    w2 = jax.random.normal(k_w2, (HID, 1), dtype=jnp.float32) * 0.1
    b2 = jax.random.normal(k_b2, (1,), dtype=jnp.float32) * 0.1

    # One-time parameter fold (done at init, not per forward call).
    w_fused, b_fused = fuse_pgmonitor_params(w1, b1, w2, b2)
    w_fused = jax.block_until_ready(w_fused)
    b_fused = jax.block_until_ready(b_fused)

    out = pgmonitor_forward(state, w_fused, b_fused)
    out = jax.block_until_ready(out)

    # Pure-JAX reference of the ORIGINAL (unfused) module.
    ref = jax.nn.sigmoid((state @ w1 + b1) @ w2 + b2)
    assert out.shape == (B, 1)
    assert jnp.allclose(out, ref, atol=1e-5, rtol=1e-5)

    print("KERNEL_OK")
</pallas_src>

<mosaic_0001>
module attributes {stable_mosaic.version = 11 : i64} {
  func.func @pgmonitor_kernel(%arg0: memref<8x16xf32, #tpu.memory_space<vmem>>, %arg1: memref<1x16xf32, #tpu.memory_space<vmem>>, %arg2: memref<1x1xf32, #tpu.memory_space<smem>>, %arg3: memref<1x8xf32, #tpu.memory_space<vmem>>) attributes {dimension_semantics = [], scalar_prefetch = 0 : i64, scratch_operands = 0 : i64, tpu.core_type = #tpu.core_type<tc>} {
    %c0 = arith.constant 0 : index
    %c0_0 = arith.constant 0 : index
    %0 = vector.load %arg0[%c0, %c0_0] : memref<8x16xf32, #tpu.memory_space<vmem>>, vector<8x16xf32>
    %c0_1 = arith.constant 0 : index
    %c0_2 = arith.constant 0 : index
    %1 = vector.load %arg1[%c0_1, %c0_2] : memref<1x16xf32, #tpu.memory_space<vmem>>, vector<1x16xf32>
    %2 = vector.broadcast %1 : vector<1x16xf32> to vector<8x16xf32>
    %3 = arith.mulf %0, %2 : vector<8x16xf32>
    %cst = arith.constant dense<0.000000e+00> : vector<8xf32>
    %4 = vector.multi_reduction <add>, %3, %cst [1] : vector<8x16xf32> to vector<8xf32>
    %c0_3 = arith.constant 0 : index
    %c0_4 = arith.constant 0 : index
    %5 = memref.load %arg2[%c0_3, %c0_4] : memref<1x1xf32, #tpu.memory_space<smem>>
    %6 = vector.broadcast %5 : f32 to vector<8xf32>
    %7 = arith.addf %4, %6 : vector<8xf32>
    %8 = arith.negf %7 : vector<8xf32>
    %9 = math.exp %8 : vector<8xf32>
    %cst_5 = arith.constant 1.000000e+00 : f32
    %10 = vector.broadcast %cst_5 : f32 to vector<8xf32>
    %11 = arith.addf %10, %9 : vector<8xf32>
    %12 = arith.divf %10, %11 : vector<8xf32>
    %13 = vector.shape_cast %12 : vector<8xf32> to vector<1x8xf32>
    %c0_6 = arith.constant 0 : index
    %c0_7 = arith.constant 0 : index
    %14 = vector.load %arg3[%c0_6, %c0_7] : memref<1x8xf32, #tpu.memory_space<vmem>>, vector<1x8xf32>
    tpu.vector_store %arg3[%c0_6, %c0_7], %13 {strides = array<i32>} : memref<1x8xf32, #tpu.memory_space<vmem>>, vector<1x8xf32>,
    return
  }
}

</mosaic_0001>

<llo_original>
// kernel: tpu_custom_call.1
$region0: #{tpu_custom_call.1}
  #allocation0 [shape = 'u32[]', space=smem, size = 0x4, offset = 0x4, fixed_abs, tag = 'smem constant byte address 0x4 - core index']
  #allocation1 [shape = 'u32[72,128]{1,0:T(1,128)}', space=vmem, size = 0x9000, scoped, tag = 'internal scratch']
  #allocation2 [shape = 'f32[1,1]{1,0:T(1,128)S(6)}', space=smem, size = 0x200, scoped, tag = 'scoped memory for tpu_custom_call.1']
  %s0 = inlined_call_operand.hbm [shape: f32[8,16], index: 0, kind: input, shape index: {}]
  %s1 = inlined_call_operand.vmem [shape: f32[1,16], index: 1, kind: input, shape index: {}]
  %s2 = inlined_call_operand.<no memory space> [shape: f32[1,1], index: 2, kind: input, shape index: {}]
  %s3 = inlined_call_operand.hbm [shape: f32[1,8], index: 3, kind: output, shape index: {}]
  %s4 = sld [smem:[#allocation0]]
  $region26: #{tpu_custom_call.1} parent=0
    _
  %s6 = ssub.s32 1, %s4
  %s7 = scalar_select 0, %s6, %s4
  %8 = sst [smem:[#allocation2]] %s2
  $region1: #{tpu_custom_call.1} parent=0
    #allocation3 [shape = 'u8[4096]{0}', space=vmem, size = 0x1000, scoped, tag = 'input window, operand 0, single buffered']
    #allocation4 [shape = 's32[1]{0}', space=sflag, size = 0x4, scoped, tag = 'scoped memory for tpu_custom_call.1']
    #allocation5 [shape = 's32[1]{0}', space=sflag, size = 0x4, scoped, tag = 'scoped memory for tpu_custom_call.1']
    #allocation6 [shape = 'u8[512]{0}', space=vmem, size = 0x400, scoped, tag = 'output window, operand 0, single buffered']
    %9 = vsyncpa [#allocation4], 0
    %10 = vsyncpa [#allocation5], 0
    // Predicated region
    $region2: #{tpu_custom_call.1} parent=1 // pred_check
      _
    $region3: #{tpu_custom_call.1} parent=1 // pred_check_branch
      %12 = sbr.rel (0) target = $region5
    $region4: #{tpu_custom_call.1} parent=1 // pred_region
      %14 = vsyncadd [#allocation4], 0
      %s16 = sshll.u32 %s0, 4
      %s17 = int_to_ptr.hbm [resolvable:$true] %s16
      %s18 = sshll.u32 [#allocation3], 4
      %s19 = int_to_ptr.vmem [resolvable:$true] %s18
      %21 = dma.hbm_to_vmem [thread:$0]  %s17, 128, %s19, [#allocation4]
    $region5: #{tpu_custom_call.1} parent=1 // pred_fallthru
      _
    // Predicated region
    $region6: #{tpu_custom_call.1} parent=1 // pred_check
      _
    $region7: #{tpu_custom_call.1} parent=1 // pred_check_branch
      %23 = sbr.rel (0) target = $region9
    $region8: #{tpu_custom_call.1} parent=1 // pred_region
      _
    $region9: #{tpu_custom_call.1} parent=1 // pred_fallthru
      _
    // Predicated region
    $region10: #{tpu_custom_call.1} parent=1 // pred_check
      _
    $region11: #{tpu_custom_call.1} parent=1 // pred_check_branch
      %25 = sbr.rel (0) target = $region13
    $region12: #{tpu_custom_call.1} parent=1 // pred_region
      _
    $region13: #{tpu_custom_call.1} parent=1 // pred_fallthru
      _
    // Predicated region
    $region14: #{tpu_custom_call.1} parent=1 // pred_check
      _
    $region15: #{tpu_custom_call.1} parent=1 // pred_check_branch
      %27 = sbr.rel (0) target = $region17
    $region16: #{tpu_custom_call.1} parent=1 // pred_region
      %29 = dma.done [#allocation4], 128
    $region17: #{tpu_custom_call.1} parent=1 // pred_fallthru
      _
    %v30 = vld [vmem:[#allocation3] sm:$0xff]
    %v31 = vld [vmem:[%s1] sm:$0x1]
    %v33 = vperm.slane %v31, 0
    %v35 = vmul.f32 %v30, %v33
    %vm36 = vcmask 130048
    %v37 = vsel %vm36, %v35, 0.0
    %38 = vadd.xlane.f32.xlu0 %v37
    %v39 = vpop.xlane.xlu0 %38
    %s40 = sld [smem:[#allocation2]]
    %v41 = vstv %s40
    %v42 = vadd.f32 %v39, %v41
    %v43 = vxor.u32 %v42, 2147483648
    %v44 = vmul.f32 %v43, 1.442695
    %v45 = vpow.pop %v44
    %v46 = vadd.f32 %v45, 1.0
    %v47 = vrcp.pop %v46
    %v48 = vmul.f32 %v46, %v47
    %v49 = vsub.f32 1.0, %v48
    %v50 = vmul.f32 %v47, %v49
    %v51 = vadd.f32 %v47, %v50
    %vm52 = vweird.f32 %v46
    %vm53 = vweird.f32 %v47
    %vm54 = vmor %vm52, %vm53
    %v55 = vsel %vm54, %v47, %v51
    %v56 = vand.u32 2147483647, %v46
    %vm57 = vcmp.eq.f32.partialorder %v56, 8.507059e+37
    %v58 = vand.u32 %v46, 2147483648
    %v59 = vor.u32 1.1754944e-38, %v58
    %v60 = vsel %vm57, %v59, %v55
    %v61 = vmul.f32 1.0, %v60
    %v63 = vlaneseq
    %v64 = vand.u32 %v63, 127
    %v65 = vperm.slane %v61, %v64
    %vm67 = vcmask 57344
    %68 = vst.msk [vmem:[#allocation6] sm:$0x1] %vm67, %v65
    // Predicated region
    $region18: #{tpu_custom_call.1} parent=1 // pred_check
      _
    $region19: #{tpu_custom_call.1} parent=1 // pred_check_branch
      %70 = sbr.rel (0) target = $region21
    $region20: #{tpu_custom_call.1} parent=1 // pred_region
      %72 = vsyncadd [#allocation5], 0
      %s74 = sshll.u32 [#allocation6], 4
      %s75 = int_to_ptr.vmem [resolvable:$true] %s74
      %s76 = sshll.u32 %s3, 4
      %s77 = int_to_ptr.hbm [resolvable:$true] %s76
      %79 = dma.vmem_to_hbm [thread:$0]  %s75, 16, %s77, [#allocation5]
    $region21: #{tpu_custom_call.1} parent=1 // pred_fallthru
      _
    // Predicated region
    $region22: #{tpu_custom_call.1} parent=1 // pred_check
      _
    $region23: #{tpu_custom_call.1} parent=1 // pred_check_branch
      %81 = sbr.rel (0) target = $region25
    $region24: #{tpu_custom_call.1} parent=1 // pred_region
      %83 = dma.done [#allocation5], 16
    $region25: #{tpu_custom_call.1} parent=1 // pred_fallthru
      _
    %84 = vsyncpa [#allocation4], 1
    %85 = vsyncpa [#allocation5], 1

</llo_original>
